<compile_context>
chip_gen: v7x
topology: tpu7x:2x2x1
jax: 0.10.0
libtpu: 0.0.40
codegen_flags: <defaults>
</compile_context>

<pallas_src>
import functools

import jax
import jax.numpy as jnp
from jax import lax
from jax.experimental import pallas as pl
from jax.experimental.pallas import tpu as pltpu


def _round_up(x, m):
    return ((x + m - 1) // m) * m


# ----------------------------------------------------------------------------
# Kernel 1: 3-layer MLP (tanh, tanh, linear) over a batch tile.
# ----------------------------------------------------------------------------
def _mlp_kernel(x_ref, w1_ref, b1_ref, w2_ref, b2_ref, w3_ref, b3_ref, o_ref):
    # bf16 MXU operands, f32 accumulation; tanh / bias adds in f32.
    h = jnp.dot(x_ref[...].astype(jnp.bfloat16), w1_ref[...],
                preferred_element_type=jnp.float32) + b1_ref[...]
    h = jnp.tanh(h)
    h = jnp.dot(h.astype(jnp.bfloat16), w2_ref[...],
                preferred_element_type=jnp.float32) + b2_ref[...]
    h = jnp.tanh(h)
    o = jnp.dot(h.astype(jnp.bfloat16), w3_ref[...],
                preferred_element_type=jnp.float32) + b3_ref[...]
    o_ref[...] = o.astype(o_ref.dtype)


def mlp_forward_pallas(x, params, *, tile_b):
    """Run the MLP on x (B, in_dim). Returns (Bp, out_dim) f32, Bp = ceil(B/tile_b)*tile_b."""
    B, in_dim = x.shape
    w1, b1, w2, b2, w3, b3 = params
    out_dim = w3.shape[1]

    Bp = _round_up(B, tile_b)
    x_p = jnp.pad(x, ((0, Bp - B), (0, 0)))

    # Weights to bf16 once (MXU-native); biases stay f32.
    w1b = w1.astype(jnp.bfloat16)
    w2b = w2.astype(jnp.bfloat16)
    w3b = w3.astype(jnp.bfloat16)

    def resident(a):
        # Whole-array block, constant index -> loaded into VMEM once.
        return pl.BlockSpec(a.shape, lambda i: (0, 0))

    out = pl.pallas_call(
        _mlp_kernel,
        out_shape=jax.ShapeDtypeStruct((Bp, out_dim), jnp.float32),
        grid_spec=pltpu.PrefetchScalarGridSpec(
            num_scalar_prefetch=0,
            grid=(Bp // tile_b,),
            in_specs=[
                pl.BlockSpec((tile_b, in_dim), lambda i: (i, 0)),
                resident(w1b), resident(b1),
                resident(w2b), resident(b2),
                resident(w3b), resident(b3),
            ],
            out_specs=pl.BlockSpec((tile_b, out_dim), lambda i: (i, 0)),
        ),
        compiler_params=pltpu.CompilerParams(
            dimension_semantics=("parallel",),
        ),
    )(x_p, w1b, b1, w2b, b2, w3b, b3)
    return out


# ----------------------------------------------------------------------------
# Kernel 2: DeepONet combine = tiled A @ T^T  (A rows = [real head ; imag head]).
# ----------------------------------------------------------------------------
def _combine_kernel(a_ref, t_ref, o_ref):
    # a_ref: (tm, nb) bf16 stacked branch heads; t_ref: (tn, nb) bf16 trunk.
    # Contract both on their last dim -> (tm, tn); no XLU transpose.
    o_ref[...] = lax.dot_general(
        a_ref[...], t_ref[...],
        (((1,), (1,)), ((), ())),
        preferred_element_type=jnp.float32,
    )


def combine_pallas(a, t, *, tm, tn):
    """a: (M, nb) bf16, t: (Np, nb) bf16 with Np % tn == 0. Returns (Mp, Np) f32."""
    M, nb = a.shape
    Np = t.shape[0]
    Mp = _round_up(M, tm)
    a_p = jnp.pad(a, ((0, Mp - M), (0, 0)))

    return pl.pallas_call(
        _combine_kernel,
        out_shape=jax.ShapeDtypeStruct((Mp, Np), jnp.float32),
        grid_spec=pltpu.PrefetchScalarGridSpec(
            num_scalar_prefetch=0,
            grid=(Mp // tm, Np // tn),
            in_specs=[
                pl.BlockSpec((tm, nb), lambda i, j: (i, 0)),
                pl.BlockSpec((tn, nb), lambda i, j: (j, 0)),
            ],
            out_specs=pl.BlockSpec((tm, tn), lambda i, j: (i, j)),
        ),
        compiler_params=pltpu.CompilerParams(
            # Pure tiled matmul: no scratch, no ordering -> both axes parallel
            # (both TensorCores used on v7x).
            dimension_semantics=("parallel", "parallel"),
        ),
    )(a_p, t)


# ----------------------------------------------------------------------------
# DeepONet forward wrapper
# ----------------------------------------------------------------------------
@functools.partial(jax.jit, static_argnames=("tm", "tn"))
def deeponet_forward(xb, xt, branch_params, trunk_params, *, tm=256, tn=256):
    """DeepONet forward.

    xb: (B, branch_in) branch (sensor) inputs.
    xt: (N, trunk_in)  trunk (query-point) inputs.
    branch_params / trunk_params: (w1, b1, w2, b2, w3, b3), biases (1, dim).
    Returns (real, imag), each (B, N) float32.
    """
    B = xb.shape[0]
    N = xt.shape[0]
    nb = trunk_params[4].shape[1]          # num_basis = trunk output width

    # Effective tiles: shrink for tiny problems (tm needs sublane (8) align,
    # tn needs lane (128) align for dense output stores).
    tn_eff = min(tn, _round_up(N, 128))
    tb_branch = min(tm, _round_up(B, 8))

    # Stage 1: the two MLPs, each run exactly once.
    branch_out = mlp_forward_pallas(xb, branch_params, tile_b=tb_branch)  # (Bp, 2*nb)
    trunk_out = mlp_forward_pallas(xt, trunk_params, tile_b=tn_eff)       # (Np, nb)
    Bp = branch_out.shape[0]

    # Stage 2: stack the real/imag branch heads as extra rows of one operand,
    # cast MXU operands to bf16, and run a single tiled A @ T^T combine.
    stacked = jnp.concatenate(
        [branch_out[:, :nb], branch_out[:, nb:]], axis=0
    ).astype(jnp.bfloat16)                                                # (2*Bp, nb)
    trunk_bf16 = trunk_out.astype(jnp.bfloat16)

    tm_eff = min(tm, 2 * Bp)               # 2*Bp is a multiple of 16 -> aligned
    out = combine_pallas(stacked, trunk_bf16, tm=tm_eff, tn=tn_eff)       # (Mp, Np)

    real = out[:B, :N]
    imag = out[Bp:Bp + B, :N]
    return real, imag


# ----------------------------------------------------------------------------
# Deterministic parameter construction + pure-JAX reference
# ----------------------------------------------------------------------------
def make_mlp_params(key, in_dim, hidden_dim, out_dim):
    k1, k2, k3 = jax.random.split(key, 3)
    scale1 = 1.0 / jnp.sqrt(in_dim)
    scale2 = 1.0 / jnp.sqrt(hidden_dim)
    w1 = jax.random.normal(k1, (in_dim, hidden_dim), jnp.float32) * scale1
    b1 = jnp.zeros((1, hidden_dim), jnp.float32)
    w2 = jax.random.normal(k2, (hidden_dim, hidden_dim), jnp.float32) * scale2
    b2 = jnp.zeros((1, hidden_dim), jnp.float32)
    w3 = jax.random.normal(k3, (hidden_dim, out_dim), jnp.float32) * scale2
    b3 = jnp.zeros((1, out_dim), jnp.float32)
    return (w1, b1, w2, b2, w3, b3)


def mlp_ref(x, params):
    w1, b1, w2, b2, w3, b3 = params
    h = jnp.tanh(x @ w1 + b1)
    h = jnp.tanh(h @ w2 + b2)
    return h @ w3 + b3


# ----------------------------------------------------------------------------
if __name__ == "__main__":
    # Small, forward-consistent shapes.
    B_BRANCH = 4      # branch batch (input-function samples)
    N_TRUNK = 8       # trunk batch (query points)
    BRANCH_IN = 16    # branch input features (sensor readings)
    TRUNK_IN = 8      # trunk input features (query coordinates)
    HIDDEN = 32       # hidden width
    NUM_BASIS = 32    # trunk output width; branch output = 2 * NUM_BASIS

    key = jax.random.PRNGKey(0)
    k_xb, k_xt, k_branch, k_trunk = jax.random.split(key, 4)

    xb = jax.random.normal(k_xb, (B_BRANCH, BRANCH_IN), jnp.float32)
    xt = jax.random.normal(k_xt, (N_TRUNK, TRUNK_IN), jnp.float32)

    branch_params = make_mlp_params(k_branch, BRANCH_IN, HIDDEN, 2 * NUM_BASIS)
    trunk_params = make_mlp_params(k_trunk, TRUNK_IN, HIDDEN, NUM_BASIS)

    real_out, imag_out = deeponet_forward(xb, xt, branch_params, trunk_params)
    jax.block_until_ready((real_out, imag_out))

    # Pure-JAX f32 reference of the same forward semantics.  The kernel runs
    # its matmuls with bf16 MXU operands (f32 accumulation), so the tolerance
    # is loosened accordingly.
    branch_ref = mlp_ref(xb, branch_params)
    trunk_ref = mlp_ref(xt, trunk_params)
    real_ref = branch_ref[:, :NUM_BASIS] @ trunk_ref.T
    imag_ref = branch_ref[:, NUM_BASIS:] @ trunk_ref.T

    assert real_out.shape == (B_BRANCH, N_TRUNK)
    assert imag_out.shape == (B_BRANCH, N_TRUNK)
    assert jnp.allclose(real_out, real_ref, atol=5e-2, rtol=5e-2), (
        float(jnp.max(jnp.abs(real_out - real_ref))))
    assert jnp.allclose(imag_out, imag_ref, atol=5e-2, rtol=5e-2), (
        float(jnp.max(jnp.abs(imag_out - imag_ref))))

    print("KERNEL_OK")
</pallas_src>

<mosaic_0001>
module attributes {stable_mosaic.version = 11 : i64} {
  func.func @_mlp_kernel(%arg0: i32, %arg1: memref<8x16xf32, #tpu.memory_space<vmem>>, %arg2: memref<16x32xbf16, #tpu.memory_space<vmem>>, %arg3: memref<1x32xf32, #tpu.memory_space<vmem>>, %arg4: memref<32x32xbf16, #tpu.memory_space<vmem>>, %arg5: memref<1x32xf32, #tpu.memory_space<vmem>>, %arg6: memref<32x64xbf16, #tpu.memory_space<vmem>>, %arg7: memref<1x64xf32, #tpu.memory_space<vmem>>, %arg8: memref<8x64xf32, #tpu.memory_space<vmem>>) attributes {dimension_semantics = [#tpu.dimension_semantics<parallel>], iteration_bounds = array<i64: 1>, scalar_prefetch = 0 : i64, scratch_operands = 0 : i64, tpu.core_type = #tpu.core_type<tc>, window_params = [{transform_indices = @transform_0, window_bounds = array<i64: 8, 16>}, {pipeline_mode = #tpu.pipeline_mode<synchronous>, transform_indices = @transform_1, window_bounds = array<i64: 16, 32>}, {pipeline_mode = #tpu.pipeline_mode<synchronous>, transform_indices = @transform_2, window_bounds = array<i64: 1, 32>}, {pipeline_mode = #tpu.pipeline_mode<synchronous>, transform_indices = @transform_3, window_bounds = array<i64: 32, 32>}, {pipeline_mode = #tpu.pipeline_mode<synchronous>, transform_indices = @transform_4, window_bounds = array<i64: 1, 32>}, {pipeline_mode = #tpu.pipeline_mode<synchronous>, transform_indices = @transform_5, window_bounds = array<i64: 32, 64>}, {pipeline_mode = #tpu.pipeline_mode<synchronous>, transform_indices = @transform_6, window_bounds = array<i64: 1, 64>}, {transform_indices = @transform_7, window_bounds = array<i64: 8, 64>}]} {
    %c0 = arith.constant 0 : index
    %c0_0 = arith.constant 0 : index
    %0 = vector.load %arg1[%c0, %c0_0] : memref<8x16xf32, #tpu.memory_space<vmem>>, vector<8x16xf32>
    %1 = arith.truncf %0 : vector<8x16xf32> to vector<8x16xbf16>
    %c0_1 = arith.constant 0 : index
    %c0_2 = arith.constant 0 : index
    %2 = vector.load %arg2[%c0_1, %c0_2] : memref<16x32xbf16, #tpu.memory_space<vmem>>, vector<16x32xbf16>
    %cst = arith.constant dense<0.000000e+00> : vector<8x32xf32>
    %3 = tpu.matmul %1, %2, %cst {dimension_numbers = #tpu.dot_dimension_numbers<[1], [0], [0], [1], [0, 0, 1, 1], [], []>} : vector<8x16xbf16>, vector<16x32xbf16>, vector<8x32xf32> -> vector<8x32xf32>
    %c0_3 = arith.constant 0 : index
    %c0_4 = arith.constant 0 : index
    %4 = vector.load %arg3[%c0_3, %c0_4] : memref<1x32xf32, #tpu.memory_space<vmem>>, vector<1x32xf32>
    %5 = vector.broadcast %4 : vector<1x32xf32> to vector<8x32xf32>
    %6 = arith.addf %3, %5 : vector<8x32xf32>
    %7 = math.tanh %6 : vector<8x32xf32>
    %8 = arith.truncf %7 : vector<8x32xf32> to vector<8x32xbf16>
    %c0_5 = arith.constant 0 : index
    %c0_6 = arith.constant 0 : index
    %9 = vector.load %arg4[%c0_5, %c0_6] : memref<32x32xbf16, #tpu.memory_space<vmem>>, vector<32x32xbf16>
    %cst_7 = arith.constant dense<0.000000e+00> : vector<8x32xf32>
    %10 = tpu.matmul %8, %9, %cst_7 {dimension_numbers = #tpu.dot_dimension_numbers<[1], [0], [0], [1], [0, 0, 1, 1], [], []>} : vector<8x32xbf16>, vector<32x32xbf16>, vector<8x32xf32> -> vector<8x32xf32>
    %c0_8 = arith.constant 0 : index
    %c0_9 = arith.constant 0 : index
    %11 = vector.load %arg5[%c0_8, %c0_9] : memref<1x32xf32, #tpu.memory_space<vmem>>, vector<1x32xf32>
    %12 = vector.broadcast %11 : vector<1x32xf32> to vector<8x32xf32>
    %13 = arith.addf %10, %12 : vector<8x32xf32>
    %14 = math.tanh %13 : vector<8x32xf32>
    %15 = arith.truncf %14 : vector<8x32xf32> to vector<8x32xbf16>
    %c0_10 = arith.constant 0 : index
    %c0_11 = arith.constant 0 : index
    %16 = vector.load %arg6[%c0_10, %c0_11] : memref<32x64xbf16, #tpu.memory_space<vmem>>, vector<32x64xbf16>
    %cst_12 = arith.constant dense<0.000000e+00> : vector<8x64xf32>
    %17 = tpu.matmul %15, %16, %cst_12 {dimension_numbers = #tpu.dot_dimension_numbers<[1], [0], [0], [1], [0, 0, 1, 1], [], []>} : vector<8x32xbf16>, vector<32x64xbf16>, vector<8x64xf32> -> vector<8x64xf32>
    %c0_13 = arith.constant 0 : index
    %c0_14 = arith.constant 0 : index
    %18 = vector.load %arg7[%c0_13, %c0_14] : memref<1x64xf32, #tpu.memory_space<vmem>>, vector<1x64xf32>
    %19 = vector.broadcast %18 : vector<1x64xf32> to vector<8x64xf32>
    %20 = arith.addf %17, %19 : vector<8x64xf32>
    %c0_15 = arith.constant 0 : index
    %c0_16 = arith.constant 0 : index
    %21 = vector.load %arg8[%c0_15, %c0_16] : memref<8x64xf32, #tpu.memory_space<vmem>>, vector<8x64xf32>
    tpu.vector_store %arg8[%c0_15, %c0_16], %20 {strides = array<i32>} : memref<8x64xf32, #tpu.memory_space<vmem>>, vector<8x64xf32>,
    return
  }
  func.func @transform_0(%arg0: i32) -> (i32, i32) {
    %c0_i32 = arith.constant 0 : i32
    %c0_i32_0 = arith.constant 0 : i32
    return %arg0, %c0_i32 : i32, i32
  }
  func.func @transform_1(%arg0: i32) -> (i32, i32) {
    %c0_i32 = arith.constant 0 : i32
    %c0_i32_0 = arith.constant 0 : i32
    %c0_i32_1 = arith.constant 0 : i32
    return %c0_i32, %c0_i32_0 : i32, i32
  }
  func.func @transform_2(%arg0: i32) -> (i32, i32) {
    %c0_i32 = arith.constant 0 : i32
    %c0_i32_0 = arith.constant 0 : i32
    %c0_i32_1 = arith.constant 0 : i32
    return %c0_i32, %c0_i32_0 : i32, i32
  }
  func.func @transform_3(%arg0: i32) -> (i32, i32) {
    %c0_i32 = arith.constant 0 : i32
    %c0_i32_0 = arith.constant 0 : i32
    %c0_i32_1 = arith.constant 0 : i32
    return %c0_i32, %c0_i32_0 : i32, i32
  }
  func.func @transform_4(%arg0: i32) -> (i32, i32) {
    %c0_i32 = arith.constant 0 : i32
    %c0_i32_0 = arith.constant 0 : i32
    %c0_i32_1 = arith.constant 0 : i32
    return %c0_i32, %c0_i32_0 : i32, i32
  }
  func.func @transform_5(%arg0: i32) -> (i32, i32) {
    %c0_i32 = arith.constant 0 : i32
    %c0_i32_0 = arith.constant 0 : i32
    %c0_i32_1 = arith.constant 0 : i32
    return %c0_i32, %c0_i32_0 : i32, i32
  }
  func.func @transform_6(%arg0: i32) -> (i32, i32) {
    %c0_i32 = arith.constant 0 : i32
    %c0_i32_0 = arith.constant 0 : i32
    %c0_i32_1 = arith.constant 0 : i32
    return %c0_i32, %c0_i32_0 : i32, i32
  }
  func.func @transform_7(%arg0: i32) -> (i32, i32) {
    %c0_i32 = arith.constant 0 : i32
    %c0_i32_0 = arith.constant 0 : i32
    return %arg0, %c0_i32 : i32, i32
  }
}

module attributes {stable_mosaic.version = 11 : i64} {
  func.func @_mlp_kernel(%arg0: i32, %arg1: memref<128x8xf32, #tpu.memory_space<vmem>>, %arg2: memref<8x32xbf16, #tpu.memory_space<vmem>>, %arg3: memref<1x32xf32, #tpu.memory_space<vmem>>, %arg4: memref<32x32xbf16, #tpu.memory_space<vmem>>, %arg5: memref<1x32xf32, #tpu.memory_space<vmem>>, %arg6: memref<32x32xbf16, #tpu.memory_space<vmem>>, %arg7: memref<1x32xf32, #tpu.memory_space<vmem>>, %arg8: memref<128x32xf32, #tpu.memory_space<vmem>>) attributes {dimension_semantics = [#tpu.dimension_semantics<parallel>], iteration_bounds = array<i64: 1>, scalar_prefetch = 0 : i64, scratch_operands = 0 : i64, tpu.core_type = #tpu.core_type<tc>, window_params = [{transform_indices = @transform_0, window_bounds = array<i64: 128, 8>}, {pipeline_mode = #tpu.pipeline_mode<synchronous>, transform_indices = @transform_1, window_bounds = array<i64: 8, 32>}, {pipeline_mode = #tpu.pipeline_mode<synchronous>, transform_indices = @transform_2, window_bounds = array<i64: 1, 32>}, {pipeline_mode = #tpu.pipeline_mode<synchronous>, transform_indices = @transform_3, window_bounds = array<i64: 32, 32>}, {pipeline_mode = #tpu.pipeline_mode<synchronous>, transform_indices = @transform_4, window_bounds = array<i64: 1, 32>}, {pipeline_mode = #tpu.pipeline_mode<synchronous>, transform_indices = @transform_5, window_bounds = array<i64: 32, 32>}, {pipeline_mode = #tpu.pipeline_mode<synchronous>, transform_indices = @transform_6, window_bounds = array<i64: 1, 32>}, {transform_indices = @transform_7, window_bounds = array<i64: 128, 32>}]} {
    %c0 = arith.constant 0 : index
    %c0_0 = arith.constant 0 : index
    %0 = vector.load %arg1[%c0, %c0_0] : memref<128x8xf32, #tpu.memory_space<vmem>>, vector<128x8xf32>
    %1 = arith.truncf %0 : vector<128x8xf32> to vector<128x8xbf16>
    %c0_1 = arith.constant 0 : index
    %c0_2 = arith.constant 0 : index
    %2 = vector.load %arg2[%c0_1, %c0_2] : memref<8x32xbf16, #tpu.memory_space<vmem>>, vector<8x32xbf16>
    %cst = arith.constant dense<0.000000e+00> : vector<128x32xf32>
    %3 = tpu.matmul %1, %2, %cst {dimension_numbers = #tpu.dot_dimension_numbers<[1], [0], [0], [1], [0, 0, 1, 1], [], []>} : vector<128x8xbf16>, vector<8x32xbf16>, vector<128x32xf32> -> vector<128x32xf32>
    %c0_3 = arith.constant 0 : index
    %c0_4 = arith.constant 0 : index
    %4 = vector.load %arg3[%c0_3, %c0_4] : memref<1x32xf32, #tpu.memory_space<vmem>>, vector<1x32xf32>
    %5 = vector.broadcast %4 : vector<1x32xf32> to vector<128x32xf32>
    %6 = arith.addf %3, %5 : vector<128x32xf32>
    %7 = math.tanh %6 : vector<128x32xf32>
    %8 = arith.truncf %7 : vector<128x32xf32> to vector<128x32xbf16>
    %c0_5 = arith.constant 0 : index
    %c0_6 = arith.constant 0 : index
    %9 = vector.load %arg4[%c0_5, %c0_6] : memref<32x32xbf16, #tpu.memory_space<vmem>>, vector<32x32xbf16>
    %cst_7 = arith.constant dense<0.000000e+00> : vector<128x32xf32>
    %10 = tpu.matmul %8, %9, %cst_7 {dimension_numbers = #tpu.dot_dimension_numbers<[1], [0], [0], [1], [0, 0, 1, 1], [], []>} : vector<128x32xbf16>, vector<32x32xbf16>, vector<128x32xf32> -> vector<128x32xf32>
    %c0_8 = arith.constant 0 : index
    %c0_9 = arith.constant 0 : index
    %11 = vector.load %arg5[%c0_8, %c0_9] : memref<1x32xf32, #tpu.memory_space<vmem>>, vector<1x32xf32>
    %12 = vector.broadcast %11 : vector<1x32xf32> to vector<128x32xf32>
    %13 = arith.addf %10, %12 : vector<128x32xf32>
    %14 = math.tanh %13 : vector<128x32xf32>
    %15 = arith.truncf %14 : vector<128x32xf32> to vector<128x32xbf16>
    %c0_10 = arith.constant 0 : index
    %c0_11 = arith.constant 0 : index
    %16 = vector.load %arg6[%c0_10, %c0_11] : memref<32x32xbf16, #tpu.memory_space<vmem>>, vector<32x32xbf16>
    %cst_12 = arith.constant dense<0.000000e+00> : vector<128x32xf32>
    %17 = tpu.matmul %15, %16, %cst_12 {dimension_numbers = #tpu.dot_dimension_numbers<[1], [0], [0], [1], [0, 0, 1, 1], [], []>} : vector<128x32xbf16>, vector<32x32xbf16>, vector<128x32xf32> -> vector<128x32xf32>
    %c0_13 = arith.constant 0 : index
    %c0_14 = arith.constant 0 : index
    %18 = vector.load %arg7[%c0_13, %c0_14] : memref<1x32xf32, #tpu.memory_space<vmem>>, vector<1x32xf32>
    %19 = vector.broadcast %18 : vector<1x32xf32> to vector<128x32xf32>
    %20 = arith.addf %17, %19 : vector<128x32xf32>
    %c0_15 = arith.constant 0 : index
    %c0_16 = arith.constant 0 : index
    %21 = vector.load %arg8[%c0_15, %c0_16] : memref<128x32xf32, #tpu.memory_space<vmem>>, vector<128x32xf32>
    tpu.vector_store %arg8[%c0_15, %c0_16], %20 {strides = array<i32>} : memref<128x32xf32, #tpu.memory_space<vmem>>, vector<128x32xf32>,
    return
  }
  func.func @transform_0(%arg0: i32) -> (i32, i32) {
    %c0_i32 = arith.constant 0 : i32
    %c0_i32_0 = arith.constant 0 : i32
    return %arg0, %c0_i32 : i32, i32
  }
  func.func @transform_1(%arg0: i32) -> (i32, i32) {
    %c0_i32 = arith.constant 0 : i32
    %c0_i32_0 = arith.constant 0 : i32
    %c0_i32_1 = arith.constant 0 : i32
    return %c0_i32, %c0_i32_0 : i32, i32
  }
  func.func @transform_2(%arg0: i32) -> (i32, i32) {
    %c0_i32 = arith.constant 0 : i32
    %c0_i32_0 = arith.constant 0 : i32
    %c0_i32_1 = arith.constant 0 : i32
    return %c0_i32, %c0_i32_0 : i32, i32
  }
  func.func @transform_3(%arg0: i32) -> (i32, i32) {
    %c0_i32 = arith.constant 0 : i32
    %c0_i32_0 = arith.constant 0 : i32
    %c0_i32_1 = arith.constant 0 : i32
    return %c0_i32, %c0_i32_0 : i32, i32
  }
  func.func @transform_4(%arg0: i32) -> (i32, i32) {
    %c0_i32 = arith.constant 0 : i32
    %c0_i32_0 = arith.constant 0 : i32
    %c0_i32_1 = arith.constant 0 : i32
    return %c0_i32, %c0_i32_0 : i32, i32
  }
  func.func @transform_5(%arg0: i32) -> (i32, i32) {
    %c0_i32 = arith.constant 0 : i32
    %c0_i32_0 = arith.constant 0 : i32
    %c0_i32_1 = arith.constant 0 : i32
    return %c0_i32, %c0_i32_0 : i32, i32
  }
  func.func @transform_6(%arg0: i32) -> (i32, i32) {
    %c0_i32 = arith.constant 0 : i32
    %c0_i32_0 = arith.constant 0 : i32
    %c0_i32_1 = arith.constant 0 : i32
    return %c0_i32, %c0_i32_0 : i32, i32
  }
  func.func @transform_7(%arg0: i32) -> (i32, i32) {
    %c0_i32 = arith.constant 0 : i32
    %c0_i32_0 = arith.constant 0 : i32
    return %arg0, %c0_i32 : i32, i32
  }
}

module attributes {stable_mosaic.version = 11 : i64} {
  func.func @_combine_kernel(%arg0: i32, %arg1: i32, %arg2: memref<16x32xbf16, #tpu.memory_space<vmem>>, %arg3: memref<128x32xbf16, #tpu.memory_space<vmem>>, %arg4: memref<16x128xf32, #tpu.memory_space<vmem>>) attributes {dimension_semantics = [#tpu.dimension_semantics<parallel>, #tpu.dimension_semantics<parallel>], iteration_bounds = array<i64: 1, 1>, scalar_prefetch = 0 : i64, scratch_operands = 0 : i64, tpu.core_type = #tpu.core_type<tc>, window_params = [{transform_indices = @transform_0, window_bounds = array<i64: 16, 32>}, {transform_indices = @transform_1, window_bounds = array<i64: 128, 32>}, {transform_indices = @transform_2, window_bounds = array<i64: 16, 128>}]} {
    %c0 = arith.constant 0 : index
    %c0_0 = arith.constant 0 : index
    %0 = vector.load %arg2[%c0, %c0_0] : memref<16x32xbf16, #tpu.memory_space<vmem>>, vector<16x32xbf16>
    %c0_1 = arith.constant 0 : index
    %c0_2 = arith.constant 0 : index
    %1 = vector.load %arg3[%c0_1, %c0_2] : memref<128x32xbf16, #tpu.memory_space<vmem>>, vector<128x32xbf16>
    %cst = arith.constant dense<0.000000e+00> : vector<16x128xf32>
    %2 = tpu.matmul %0, %1, %cst {dimension_numbers = #tpu.dot_dimension_numbers<[1], [1], [0], [0], [0, 0, 1, 0], [], []>} : vector<16x32xbf16>, vector<128x32xbf16>, vector<16x128xf32> -> vector<16x128xf32>
    %c0_3 = arith.constant 0 : index
    %c0_4 = arith.constant 0 : index
    %3 = vector.load %arg4[%c0_3, %c0_4] : memref<16x128xf32, #tpu.memory_space<vmem>>, vector<16x128xf32>
    tpu.vector_store %arg4[%c0_3, %c0_4], %2 {strides = array<i32>} : memref<16x128xf32, #tpu.memory_space<vmem>>, vector<16x128xf32>,
    return
  }
  func.func @transform_0(%arg0: i32, %arg1: i32) -> (i32, i32) {
    %c0_i32 = arith.constant 0 : i32
    %c0_i32_0 = arith.constant 0 : i32
    return %arg0, %c0_i32 : i32, i32
  }
  func.func @transform_1(%arg0: i32, %arg1: i32) -> (i32, i32) {
    %c0_i32 = arith.constant 0 : i32
    %c0_i32_0 = arith.constant 0 : i32
    return %arg1, %c0_i32 : i32, i32
  }
  func.func @transform_2(%arg0: i32, %arg1: i32) -> (i32, i32) {
    %c0_i32 = arith.constant 0 : i32
    return %arg0, %arg1 : i32, i32
  }
}

</mosaic_0001>

<llo_original>
// kernel: deeponet_forward.5
$region0: #{deeponet_forward.5}
  #allocation0 [shape = 'u32[]', space=smem, size = 0x4, offset = 0x4, fixed_abs, tag = 'smem constant byte address 0x4 - core index']
  #allocation1 [shape = 'u32[144,128]{1,0:T(1,128)}', space=vmem, size = 0x12000, scoped, tag = 'internal scratch']
  %s0 = inlined_call_operand.vmem [shape: bf16[16,32], index: 0, kind: input, shape index: {}]
  %s1 = inlined_call_operand.vmem [shape: bf16[128,32], index: 1, kind: input, shape index: {}]
  %s2 = inlined_call_operand.vmem [shape: f32[16,128], index: 2, kind: output, shape index: {}]
  %s3 = sld [smem:[#allocation0]]
  $region18: #{deeponet_forward.5} parent=0
    _
  %s5 = ssub.s32 1, %s3
  %s6 = scalar_select 0, %s5, %s3
  // Predicated region
  $region2: #{deeponet_forward.5} parent=0 // pred_check
    _
  $region3: #{deeponet_forward.5} parent=0 // pred_check_branch
    %8 = sbr.rel (0) target = $region5
  $region4: #{deeponet_forward.5} parent=0 // pred_region
    _
  $region5: #{deeponet_forward.5} parent=0 // pred_fallthru
    _
  // Predicated region
  $region6: #{deeponet_forward.5} parent=0 // pred_check
    _
  $region7: #{deeponet_forward.5} parent=0 // pred_check_branch
    %10 = sbr.rel (0) target = $region9
  $region8: #{deeponet_forward.5} parent=0 // pred_region
    _
  $region9: #{deeponet_forward.5} parent=0 // pred_fallthru
    _
  %v12 = vld [vmem:[%s0] sm:$0xf]
  %v13 = vld [vmem:[%s0 + $0x4] sm:$0xf]
  %v14 = vld [vmem:[%s1] sm:$0xf]
  %v15 = vld [vmem:[%s1 + $0x4] sm:$0xf]
  %v16 = vld [vmem:[%s1 + $0x8] sm:$0xf]
  %v17 = vld [vmem:[%s1 + $0xc] sm:$0xf]
  %v18 = vld [vmem:[%s1 + $0x10] sm:$0xf]
  %v19 = vld [vmem:[%s1 + $0x14] sm:$0xf]
  %v20 = vld [vmem:[%s1 + $0x18] sm:$0xf]
  %v21 = vld [vmem:[%s1 + $0x1c] sm:$0xf]
  %v22 = vld [vmem:[%s1 + $0x20] sm:$0xf]
  %v23 = vld [vmem:[%s1 + $0x24] sm:$0xf]
  %v24 = vld [vmem:[%s1 + $0x28] sm:$0xf]
  %v25 = vld [vmem:[%s1 + $0x2c] sm:$0xf]
  %v26 = vld [vmem:[%s1 + $0x30] sm:$0xf]
  %v27 = vld [vmem:[%s1 + $0x34] sm:$0xf]
  %v28 = vld [vmem:[%s1 + $0x38] sm:$0xf]
  %v29 = vld [vmem:[%s1 + $0x3c] sm:$0xf]
  %v32 = vunpack.c.l.b16 %v12
  %v33 = vunpack.c.l.b16 %v13
  %v34 = vpack.c.b16 %v33, %v32
  %v51 = vunpack.c.l.b16 %v14
  %v52 = vunpack.c.l.b16 %v15
  %v53 = vunpack.c.l.b16 %v16
  %v54 = vunpack.c.l.b16 %v17
  %v55 = vunpack.c.l.b16 %v18
  %v56 = vunpack.c.l.b16 %v19
  %v57 = vunpack.c.l.b16 %v20
  %v58 = vunpack.c.l.b16 %v21
  %v59 = vunpack.c.l.b16 %v22
  %v60 = vunpack.c.l.b16 %v23
  %v61 = vunpack.c.l.b16 %v24
  %v62 = vunpack.c.l.b16 %v25
  %v63 = vunpack.c.l.b16 %v26
  %v64 = vunpack.c.l.b16 %v27
  %v65 = vunpack.c.l.b16 %v28
  %v66 = vunpack.c.l.b16 %v29
  %v67 = vpack.c.b16 %v52, %v51
  %v68 = vpack.c.b16 %v54, %v53
  %v69 = vpack.c.b16 %v56, %v55
  %v70 = vpack.c.b16 %v58, %v57
  %v71 = vpack.c.b16 %v60, %v59
  %v72 = vpack.c.b16 %v62, %v61
  %v73 = vpack.c.b16 %v64, %v63
  %v74 = vpack.c.b16 %v66, %v65
  %vm75 = vcmask 261120
  %v77 = vsel %vm75, %v34, 0
  %v80 = vsel %vm75, %v67, 0
  %v83 = vsel %vm75, %v68, 0
  %v86 = vsel %vm75, %v69, 0
  %v89 = vsel %vm75, %v70, 0
  %v92 = vsel %vm75, %v71, 0
  %v95 = vsel %vm75, %v72, 0
  %v98 = vsel %vm75, %v73, 0
  %v101 = vsel %vm75, %v74, 0
  %103 = vmatprep.subr.bf16.mxu0 0
  %104 = vmatpush1.bf16.xpose.msra.mxu0 %v80
  %105 = vmatprep.subr.bf16.mxu0 0
  %106 = vmatpush1.bf16.xpose.msra.mxu0 %v83
  %107 = vmatprep.subr.bf16.mxu0 0
  %108 = vmatpush1.bf16.xpose.msra.mxu0 %v86
  %109 = vmatprep.subr.bf16.mxu0 0
  %110 = vmatpush1.bf16.xpose.msra.mxu0 %v89
  %111 = vmatprep.subr.bf16.mxu0 0
  %112 = vmatpush1.bf16.xpose.msra.mxu0 %v92
  %113 = vmatprep.subr.bf16.mxu0 0
  %114 = vmatpush1.bf16.xpose.msra.mxu0 %v95
  %115 = vmatprep.subr.bf16.mxu0 0
  %116 = vmatpush1.bf16.xpose.msra.mxu0 %v98
  %117 = vmatprep.subr.bf16.mxu0 0
  %118 = vmatpush1.bf16.xpose.msra.mxu0 %v101
  %119 = vmatprep.subr.bf16.mxu0 0
  %120 = vmatpush1.bf16.xpose.msra.mxu0 0
  %121 = vmatprep.subr.bf16.mxu0 0
  %122 = vmatpush1.bf16.xpose.msra.mxu0 0
  %123 = vmatprep.subr.bf16.mxu0 0
  %124 = vmatpush1.bf16.xpose.msra.mxu0 0
  %125 = vmatprep.subr.bf16.mxu0 0
  %126 = vmatpush1.bf16.xpose.msra.mxu0 0
  %127 = vmatprep.subr.bf16.mxu0 0
  %128 = vmatpush1.bf16.xpose.msra.mxu0 0
  %129 = vmatprep.subr.bf16.mxu0 0
  %130 = vmatpush1.bf16.xpose.msra.mxu0 0
  %131 = vmatprep.subr.bf16.mxu0 0
  %132 = vmatpush1.bf16.xpose.msra.mxu0 0
  %133 = vmatprep.subr.bf16.mxu0 0
  %134 = vmatpush1.bf16.xpose.msra.mxu0 0
  %135 = vmatprep.mubr.bf16.mxu0 0
  %136 = vmatmul.mubr.bf16.gmra.mrb[0].mxu0 %v77
  %v137 = vpop.f32.mrb[0].mxu0
  %v138 = vadd.f32 0.0, %v137
  %v139 = vpop.f32.mrb[0].mxu0
  %v140 = vpop.f32.mrb[0].mxu0
  %v141 = vadd.f32 0.0, %v140
  %v142 = vpop.f32.mrb[0].mxu0
  %143 = vdwg.mxu0
  %144 = vst [vmem:[%s2] sm:$0xff] %v138
  %145 = vst [vmem:[%s2 + $0x8] sm:$0xff] %v141
  // Predicated region
  $region10: #{deeponet_forward.5} parent=0 // pred_check
    _
  $region11: #{deeponet_forward.5} parent=0 // pred_check_branch
    %147 = sbr.rel (0) target = $region13
  $region12: #{deeponet_forward.5} parent=0 // pred_region
    _
  $region13: #{deeponet_forward.5} parent=0 // pred_fallthru
    _
  // Predicated region
  $region14: #{deeponet_forward.5} parent=0 // pred_check
    _
  $region15: #{deeponet_forward.5} parent=0 // pred_check_branch
    %149 = sbr.rel (0) target = $region17
  $region16: #{deeponet_forward.5} parent=0 // pred_region
    _
  $region17: #{deeponet_forward.5} parent=0 // pred_fallthru
    _

// kernel: deeponet_forward.3
$region0: #{deeponet_forward.3}
  #allocation0 [shape = 'u32[]', space=smem, size = 0x4, offset = 0x4, fixed_abs, tag = 'smem constant byte address 0x4 - core index']
  #allocation1 [shape = 'u32[144,128]{1,0:T(1,128)}', space=vmem, size = 0x12000, scoped, tag = 'internal scratch']
  %s0 = inlined_call_operand.vmem [shape: f32[8,16], index: 0, kind: input, shape index: {}]
  %s1 = inlined_call_operand.vmem [shape: bf16[16,32], index: 1, kind: input, shape index: {}]
  %s2 = inlined_call_operand.vmem [shape: f32[1,32], index: 2, kind: input, shape index: {}]
  %s3 = inlined_call_operand.vmem [shape: bf16[32,32], index: 3, kind: input, shape index: {}]
  %s4 = inlined_call_operand.vmem [shape: f32[1,32], index: 4, kind: input, shape index: {}]
  %s5 = inlined_call_operand.vmem [shape: bf16[32,64], index: 5, kind: input, shape index: {}]
  %s6 = inlined_call_operand.vmem [shape: f32[1,64], index: 6, kind: input, shape index: {}]
  %s7 = inlined_call_operand.vmem [shape: f32[8,64], index: 7, kind: output, shape index: {}]
  %s8 = sld [smem:[#allocation0]]
  $region38: #{deeponet_forward.3} parent=0
    _
  %s10 = ssub.s32 1, %s8
  %s11 = scalar_select 0, %s10, %s8
  // Predicated region
  $region2: #{deeponet_forward.3} parent=0 // pred_check
    _
  $region3: #{deeponet_forward.3} parent=0 // pred_check_branch
    %13 = sbr.rel (0) target = $region5
  $region4: #{deeponet_forward.3} parent=0 // pred_region
    _
  $region5: #{deeponet_forward.3} parent=0 // pred_fallthru
    _
  // Predicated region
  $region6: #{deeponet_forward.3} parent=0 // pred_check
    _
  $region7: #{deeponet_forward.3} parent=0 // pred_check_branch
    %15 = sbr.rel (0) target = $region9
  $region8: #{deeponet_forward.3} parent=0 // pred_region
    _
  $region9: #{deeponet_forward.3} parent=0 // pred_fallthru
    _
  // Predicated region
  $region10: #{deeponet_forward.3} parent=0 // pred_check
    _
  $region11: #{deeponet_forward.3} parent=0 // pred_check_branch
    %17 = sbr.rel (0) target = $region13
  $region12: #{deeponet_forward.3} parent=0 // pred_region
    _
  $region13: #{deeponet_forward.3} parent=0 // pred_fallthru
    _
  // Predicated region
  $region14: #{deeponet_forward.3} parent=0 // pred_check
    _
  $region15: #{deeponet_forward.3} parent=0 // pred_check_branch
    %19 = sbr.rel (0) target = $region17
  $region16: #{deeponet_forward.3} parent=0 // pred_region
    _
  $region17: #{deeponet_forward.3} parent=0 // pred_fallthru
    _
  // Predicated region
  $region18: #{deeponet_forward.3} parent=0 // pred_check
    _
  $region19: #{deeponet_forward.3} parent=0 // pred_check_branch
    %21 = sbr.rel (0) target = $region21
  $region20: #{deeponet_forward.3} parent=0 // pred_region
    _
  $region21: #{deeponet_forward.3} parent=0 // pred_fallthru
    _
  // Predicated region
  $region22: #{deeponet_forward.3} parent=0 // pred_check
    _
  $region23: #{deeponet_forward.3} parent=0 // pred_check_branch
    %23 = sbr.rel (0) target = $region25
  $region24: #{deeponet_forward.3} parent=0 // pred_region
    _
  $region25: #{deeponet_forward.3} parent=0 // pred_fallthru
    _
  // Predicated region
  $region26: #{deeponet_forward.3} parent=0 // pred_check
    _
  $region27: #{deeponet_forward.3} parent=0 // pred_check_branch
    %25 = sbr.rel (0) target = $region29
  $region28: #{deeponet_forward.3} parent=0 // pred_region
    _
  $region29: #{deeponet_forward.3} parent=0 // pred_fallthru
    _
  %v27 = vld [vmem:[%s0] sm:$0xff]
  %v28 = vpack.c.bf16 %v27, %v27
  %v29 = vld [vmem:[%s1] sm:$0xf]
  %v30 = vld [vmem:[%s1 + $0x4] sm:$0xf]
  %v31 = vld [vmem:[%s2] sm:$0x1]
  %v33 = vlaneseq
  %v34 = vshrl.u32 %v33, 7
  %v35 = vsub.s32 0, %v34
  %v36 = vrot.slane %v31, %v35
  %v40 = vunpack.c.l.b16 %v29
  %v41 = vunpack.c.l.b16 %v30
  %v42 = vpack.c.b16 %v41, %v40
  %vm44 = vcmask 130048
  %v46 = vsel %vm44, %v28, 0
  %48 = vmatprep.subr.bf16.mxu0 0
  %49 = vmatpush1.bf16.msra.mxu0 %v42
  %50 = vmatprep.subr.bf16.mxu0 0
  %51 = vmatpush1.bf16.msra.mxu0 0
  %52 = vmatprep.subr.bf16.mxu0 0
  %53 = vmatpush1.bf16.msra.mxu0 0
  %54 = vmatprep.subr.bf16.mxu0 0
  %55 = vmatpush1.bf16.msra.mxu0 0
  %56 = vmatprep.subr.bf16.mxu0 0
  %57 = vmatpush1.bf16.msra.mxu0 0
  %58 = vmatprep.subr.bf16.mxu0 0
  %59 = vmatpush1.bf16.msra.mxu0 0
  %60 = vmatprep.subr.bf16.mxu0 0
  %61 = vmatpush1.bf16.msra.mxu0 0
  %62 = vmatprep.subr.bf16.mxu0 0
  %63 = vmatpush1.bf16.msra.mxu0 0
  %64 = vmatprep.subr.bf16.mxu0 0
  %65 = vmatpush1.bf16.msra.mxu0 0
  %66 = vmatprep.subr.bf16.mxu0 0
  %67 = vmatpush1.bf16.msra.mxu0 0
  %68 = vmatprep.subr.bf16.mxu0 0
  %69 = vmatpush1.bf16.msra.mxu0 0
  %70 = vmatprep.subr.bf16.mxu0 0
  %71 = vmatpush1.bf16.msra.mxu0 0
  %72 = vmatprep.subr.bf16.mxu0 0
  %73 = vmatpush1.bf16.msra.mxu0 0
  %74 = vmatprep.subr.bf16.mxu0 0
  %75 = vmatpush1.bf16.msra.mxu0 0
  %76 = vmatprep.subr.bf16.mxu0 0
  %77 = vmatpush1.bf16.msra.mxu0 0
  %78 = vmatprep.subr.bf16.mxu0 0
  %79 = vmatpush1.bf16.msra.mxu0 0
  %80 = vmatprep.mubr.bf16.mxu0 0
  %81 = vmatmul.mubr.bf16.gmra.mrb[0].mxu0 %v46
  %v82 = vpop.f32.mrb[0].mxu0
  %v83 = vadd.f32 %v36, %v82
  %v84 = vpop.f32.mrb[0].mxu0
  %v85 = vpop.f32.mrb[0].mxu0
  %v86 = vpop.f32.mrb[0].mxu0
  %87 = vdwg.mxu0
  %v88 = vtanh.pop %v83
  %v89 = vpack.c.bf16 %v88, %v88
  %v90 = vld [vmem:[%s3] sm:$0xf]
  %v91 = vld [vmem:[%s3 + $0x4] sm:$0xf]
  %v92 = vld [vmem:[%s3 + $0x8] sm:$0xf]
  %v93 = vld [vmem:[%s3 + $0xc] sm:$0xf]
  %v94 = vld [vmem:[%s4] sm:$0x1]
  %v96 = vlaneseq
  %v97 = vshrl.u32 %v96, 7
  %v98 = vsub.s32 0, %v97
  %v99 = vrot.slane %v94, %v98
  %v105 = vunpack.c.l.b16 %v90
  %v106 = vunpack.c.l.b16 %v91
  %v107 = vunpack.c.l.b16 %v92
  %v108 = vunpack.c.l.b16 %v93
  %v109 = vpack.c.b16 %v106, %v105
  %v110 = vpack.c.b16 %v108, %v107
  %vm113 = vcmask 261120
  %v115 = vsel %vm113, %v89, 0
  %117 = vmatprep.subr.bf16.mxu0 0
  %118 = vmatpush1.bf16.msra.mxu0 %v109
  %119 = vmatprep.subr.bf16.mxu0 0
  %120 = vmatpush1.bf16.msra.mxu0 %v110
  %121 = vmatprep.subr.bf16.mxu0 0
  %122 = vmatpush1.bf16.msra.mxu0 0
  %123 = vmatprep.subr.bf16.mxu0 0
  %124 = vmatpush1.bf16.msra.mxu0 0
  %125 = vmatprep.subr.bf16.mxu0 0
  %126 = vmatpush1.bf16.msra.mxu0 0
  %127 = vmatprep.subr.bf16.mxu0 0
  %128 = vmatpush1.bf16.msra.mxu0 0
  %129 = vmatprep.subr.bf16.mxu0 0
  %130 = vmatpush1.bf16.msra.mxu0 0
  %131 = vmatprep.subr.bf16.mxu0 0
  %132 = vmatpush1.bf16.msra.mxu0 0
  %133 = vmatprep.subr.bf16.mxu0 0
  %134 = vmatpush1.bf16.msra.mxu0 0
  %135 = vmatprep.subr.bf16.mxu0 0
  %136 = vmatpush1.bf16.msra.mxu0 0
  %137 = vmatprep.subr.bf16.mxu0 0
  %138 = vmatpush1.bf16.msra.mxu0 0
  %139 = vmatprep.subr.bf16.mxu0 0
  %140 = vmatpush1.bf16.msra.mxu0 0
  %141 = vmatprep.subr.bf16.mxu0 0
  %142 = vmatpush1.bf16.msra.mxu0 0
  %143 = vmatprep.subr.bf16.mxu0 0
  %144 = vmatpush1.bf16.msra.mxu0 0
  %145 = vmatprep.subr.bf16.mxu0 0
  %146 = vmatpush1.bf16.msra.mxu0 0
  %147 = vmatprep.subr.bf16.mxu0 0
  %148 = vmatpush1.bf16.msra.mxu0 0
  %149 = vmatprep.mubr.bf16.mxu0 0
  %150 = vmatmul.mubr.bf16.gmra.mrb[0].mxu0 %v115
  %v151 = vpop.f32.mrb[0].mxu0
  %v152 = vadd.f32 %v99, %v151
  %v153 = vpop.f32.mrb[0].mxu0
  %v154 = vpop.f32.mrb[0].mxu0
  %v155 = vpop.f32.mrb[0].mxu0
  %156 = vdwg.mxu0
  %v157 = vtanh.pop %v152
  %v158 = vpack.c.bf16 %v157, %v157
  %v159 = vld [vmem:[%s5] sm:$0xf]
  %v160 = vld [vmem:[%s5 + $0x4] sm:$0xf]
  %v161 = vld [vmem:[%s5 + $0x8] sm:$0xf]
  %v162 = vld [vmem:[%s5 + $0xc] sm:$0xf]
  %v163 = vld [vmem:[%s6] sm:$0x1]
  %v165 = vlaneseq
  %v166 = vshrl.u32 %v165, 7
  %v167 = vsub.s32 0, %v166
  %v168 = vrot.slane %v163, %v167
  %v174 = vunpack.c.l.b16 %v159
  %v175 = vunpack.c.l.b16 %v160
  %v176 = vunpack.c.l.b16 %v161
  %v177 = vunpack.c.l.b16 %v162
  %v178 = vpack.c.b16 %v175, %v174
  %v179 = vpack.c.b16 %v177, %v176
  %v183 = vsel %vm113, %v158, 0
  %185 = vmatprep.subr.bf16.mxu0 0
  %186 = vmatpush1.bf16.msra.mxu0 %v178
  %187 = vmatprep.subr.bf16.mxu0 0
  %188 = vmatpush1.bf16.msra.mxu0 %v179
  %189 = vmatprep.subr.bf16.mxu0 0
  %190 = vmatpush1.bf16.msra.mxu0 0
  %191 = vmatprep.subr.bf16.mxu0 0
  %192 = vmatpush1.bf16.msra.mxu0 0
  %193 = vmatprep.subr.bf16.mxu0 0
  %194 = vmatpush1.bf16.msra.mxu0 0
  %195 = vmatprep.subr.bf16.mxu0 0
  %196 = vmatpush1.bf16.msra.mxu0 0
  %197 = vmatprep.subr.bf16.mxu0 0
  %198 = vmatpush1.bf16.msra.mxu0 0
  %199 = vmatprep.subr.bf16.mxu0 0
  %200 = vmatpush1.bf16.msra.mxu0 0
  %201 = vmatprep.subr.bf16.mxu0 0
  %202 = vmatpush1.bf16.msra.mxu0 0
  %203 = vmatprep.subr.bf16.mxu0 0
  %204 = vmatpush1.bf16.msra.mxu0 0
  %205 = vmatprep.subr.bf16.mxu0 0
  %206 = vmatpush1.bf16.msra.mxu0 0
  %207 = vmatprep.subr.bf16.mxu0 0
  %208 = vmatpush1.bf16.msra.mxu0 0
  %209 = vmatprep.subr.bf16.mxu0 0
  %210 = vmatpush1.bf16.msra.mxu0 0
  %211 = vmatprep.subr.bf16.mxu0 0
  %212 = vmatpush1.bf16.msra.mxu0 0
  %213 = vmatprep.subr.bf16.mxu0 0
  %214 = vmatpush1.bf16.msra.mxu0 0
  %215 = vmatprep.subr.bf16.mxu0 0
  %216 = vmatpush1.bf16.msra.mxu0 0
  %217 = vmatprep.mubr.bf16.mxu0 0
  %218 = vmatmul.mubr.bf16.gmra.mrb[0].mxu0 %v183
  %v219 = vpop.f32.mrb[0].mxu0
  %v220 = vadd.f32 %v168, %v219
  %v221 = vpop.f32.mrb[0].mxu0
  %v222 = vpop.f32.mrb[0].mxu0
  %v223 = vpop.f32.mrb[0].mxu0
  %224 = vdwg.mxu0
  %vm225 = vcmask 523264
  %226 = vst.msk [vmem:[%s7] sm:$0xff] %vm225, %v220
  // Predicated region
  $region30: #{deeponet_forward.3} parent=0 // pred_check
    _
  $region31: #{deeponet_forward.3} parent=0 // pred_check_branch
    %228 = sbr.rel (0) target = $region33
  $region32: #{deeponet_forward.3} parent=0 // pred_region
    _
  $region33: #{deeponet_forward.3} parent=0 // pred_fallthru
    _
  // Predicated region
  $region34: #{deeponet_forward.3} parent=0 // pred_check
    _
  $region35: #{deeponet_forward.3} parent=0 // pred_check_branch
    %230 = sbr.rel (0) target = $region37
  $region36: #{deeponet_forward.3} parent=0 // pred_region
    _
  $region37: #{deeponet_forward.3} parent=0 // pred_fallthru
    _

// kernel: deeponet_forward.4
$region0: #{deeponet_forward.4}
  #allocation0 [shape = 'u32[]', space=smem, size = 0x4, offset = 0x4, fixed_abs, tag = 'smem constant byte address 0x4 - core index']
  #allocation1 [shape = 'u32[144,128]{1,0:T(1,128)}', space=vmem, size = 0x12000, scoped, tag = 'internal scratch']
  %s0 = inlined_call_operand.vmem [shape: f32[128,8], index: 0, kind: input, shape index: {}]
  %s1 = inlined_call_operand.vmem [shape: bf16[8,32], index: 1, kind: input, shape index: {}]
  %s2 = inlined_call_operand.vmem [shape: f32[1,32], index: 2, kind: input, shape index: {}]
  %s3 = inlined_call_operand.vmem [shape: bf16[32,32], index: 3, kind: input, shape index: {}]
  %s4 = inlined_call_operand.vmem [shape: f32[1,32], index: 4, kind: input, shape index: {}]
  %s5 = inlined_call_operand.vmem [shape: bf16[32,32], index: 5, kind: input, shape index: {}]
  %s6 = inlined_call_operand.vmem [shape: f32[1,32], index: 6, kind: input, shape index: {}]
  %s7 = inlined_call_operand.vmem [shape: f32[128,32], index: 7, kind: output, shape index: {}]
  %s8 = sld [smem:[#allocation0]]
  $region38: #{deeponet_forward.4} parent=0
    _
  %s10 = ssub.s32 1, %s8
  %s11 = scalar_select 0, %s10, %s8
  // Predicated region
  $region2: #{deeponet_forward.4} parent=0 // pred_check
    _
  $region3: #{deeponet_forward.4} parent=0 // pred_check_branch
    %13 = sbr.rel (0) target = $region5
  $region4: #{deeponet_forward.4} parent=0 // pred_region
    _
  $region5: #{deeponet_forward.4} parent=0 // pred_fallthru
    _
  // Predicated region
  $region6: #{deeponet_forward.4} parent=0 // pred_check
    _
  $region7: #{deeponet_forward.4} parent=0 // pred_check_branch
    %15 = sbr.rel (0) target = $region9
  $region8: #{deeponet_forward.4} parent=0 // pred_region
    _
  $region9: #{deeponet_forward.4} parent=0 // pred_fallthru
    _
  // Predicated region
  $region10: #{deeponet_forward.4} parent=0 // pred_check
    _
  $region11: #{deeponet_forward.4} parent=0 // pred_check_branch
    %17 = sbr.rel (0) target = $region13
  $region12: #{deeponet_forward.4} parent=0 // pred_region
    _
  $region13: #{deeponet_forward.4} parent=0 // pred_fallthru
    _
  // Predicated region
  $region14: #{deeponet_forward.4} parent=0 // pred_check
    _
  $region15: #{deeponet_forward.4} parent=0 // pred_check_branch
    %19 = sbr.rel (0) target = $region17
  $region16: #{deeponet_forward.4} parent=0 // pred_region
    _
  $region17: #{deeponet_forward.4} parent=0 // pred_fallthru
    _
  // Predicated region
  $region18: #{deeponet_forward.4} parent=0 // pred_check
    _
  $region19: #{deeponet_forward.4} parent=0 // pred_check_branch
    %21 = sbr.rel (0) target = $region21
  $region20: #{deeponet_forward.4} parent=0 // pred_region
    _
  $region21: #{deeponet_forward.4} parent=0 // pred_fallthru
    _
  // Predicated region
  $region22: #{deeponet_forward.4} parent=0 // pred_check
    _
  $region23: #{deeponet_forward.4} parent=0 // pred_check_branch
    %23 = sbr.rel (0) target = $region25
  $region24: #{deeponet_forward.4} parent=0 // pred_region
    _
  $region25: #{deeponet_forward.4} parent=0 // pred_fallthru
    _
  // Predicated region
  $region26: #{deeponet_forward.4} parent=0 // pred_check
    _
  $region27: #{deeponet_forward.4} parent=0 // pred_check_branch
    %25 = sbr.rel (0) target = $region29
  $region28: #{deeponet_forward.4} parent=0 // pred_region
    _
  $region29: #{deeponet_forward.4} parent=0 // pred_fallthru
    _
  %v27 = vld [vmem:[%s0] sm:$0xff]
  %v28 = vld [vmem:[%s0 + $0x8] sm:$0xff]
  %v29 = vld [vmem:[%s0 + $0x10] sm:$0xff]
  %v30 = vld [vmem:[%s0 + $0x18] sm:$0xff]
  %v31 = vld [vmem:[%s0 + $0x20] sm:$0xff]
  %v32 = vld [vmem:[%s0 + $0x28] sm:$0xff]
  %v33 = vld [vmem:[%s0 + $0x30] sm:$0xff]
  %v34 = vld [vmem:[%s0 + $0x38] sm:$0xff]
  %v35 = vld [vmem:[%s0 + $0x40] sm:$0xff]
  %v36 = vld [vmem:[%s0 + $0x48] sm:$0xff]
  %v37 = vld [vmem:[%s0 + $0x50] sm:$0xff]
  %v38 = vld [vmem:[%s0 + $0x58] sm:$0xff]
  %v39 = vld [vmem:[%s0 + $0x60] sm:$0xff]
  %v40 = vld [vmem:[%s0 + $0x68] sm:$0xff]
  %v41 = vld [vmem:[%s0 + $0x70] sm:$0xff]
  %v42 = vld [vmem:[%s0 + $0x78] sm:$0xff]
  %v43 = vpack.c.bf16 %v28, %v27
  %v44 = vpack.c.bf16 %v30, %v29
  %v45 = vpack.c.bf16 %v32, %v31
  %v46 = vpack.c.bf16 %v34, %v33
  %v47 = vpack.c.bf16 %v36, %v35
  %v48 = vpack.c.bf16 %v38, %v37
  %v49 = vpack.c.bf16 %v40, %v39
  %v50 = vpack.c.bf16 %v42, %v41
  %v51 = vld [vmem:[%s1] sm:$0xf]
  %v52 = vld [vmem:[%s2] sm:$0x1]
  %v54 = vlaneseq
  %v55 = vshrl.u32 %v54, 7
  %v56 = vsub.s32 0, %v55
  %v57 = vrot.slane %v52, %v56
  %vm59 = vcmask 64512
  %v61 = vsel %vm59, %v43, 0
  %v64 = vsel %vm59, %v44, 0
  %v67 = vsel %vm59, %v45, 0
  %v70 = vsel %vm59, %v46, 0
  %v73 = vsel %vm59, %v47, 0
  %v76 = vsel %vm59, %v48, 0
  %v79 = vsel %vm59, %v49, 0
  %v82 = vsel %vm59, %v50, 0
  %vm84 = vcmask 1043456
  %v86 = vsel %vm84, %v51, 0
  %88 = vmatprep.subr.bf16.mxu0 0
  %89 = vmatpush1.bf16.msra.mxu0 %v86
  %90 = vmatprep.subr.bf16.mxu0 0
  %91 = vmatpush1.bf16.msra.mxu0 0
  %92 = vmatprep.subr.bf16.mxu0 0
  %93 = vmatpush1.bf16.msra.mxu0 0
  %94 = vmatprep.subr.bf16.mxu0 0
  %95 = vmatpush1.bf16.msra.mxu0 0
  %96 = vmatprep.subr.bf16.mxu0 0
  %97 = vmatpush1.bf16.msra.mxu0 0
  %98 = vmatprep.subr.bf16.mxu0 0
  %99 = vmatpush1.bf16.msra.mxu0 0
  %100 = vmatprep.subr.bf16.mxu0 0
  %101 = vmatpush1.bf16.msra.mxu0 0
  %102 = vmatprep.subr.bf16.mxu0 0
  %103 = vmatpush1.bf16.msra.mxu0 0
  %104 = vmatprep.subr.bf16.mxu0 0
  %105 = vmatpush1.bf16.msra.mxu0 0
  %106 = vmatprep.subr.bf16.mxu0 0
  %107 = vmatpush1.bf16.msra.mxu0 0
  %108 = vmatprep.subr.bf16.mxu0 0
  %109 = vmatpush1.bf16.msra.mxu0 0
  %110 = vmatprep.subr.bf16.mxu0 0
  %111 = vmatpush1.bf16.msra.mxu0 0
  %112 = vmatprep.subr.bf16.mxu0 0
  %113 = vmatpush1.bf16.msra.mxu0 0
  %114 = vmatprep.subr.bf16.mxu0 0
  %115 = vmatpush1.bf16.msra.mxu0 0
  %116 = vmatprep.subr.bf16.mxu0 0
  %117 = vmatpush1.bf16.msra.mxu0 0
  %118 = vmatprep.subr.bf16.mxu0 0
  %119 = vmatpush1.bf16.msra.mxu0 0
  %120 = vmatprep.mubr.bf16.mxu0 0
  %121 = vmatmul.mubr.bf16.gmra.mrb[0].mxu0 %v61
  %v122 = vpop.f32.mrb[0].mxu0
  %v123 = vadd.f32 %v57, %v122
  %v124 = vpop.f32.mrb[0].mxu0
  %v125 = vpop.f32.mrb[0].mxu0
  %v126 = vadd.f32 %v57, %v125
  %v127 = vpop.f32.mrb[0].mxu0
  %128 = vmatprep.mubr.bf16.mxu0 0
  %129 = vmatmul.mubr.bf16.gmra.mrb[0].mxu0 %v64
  %v130 = vpop.f32.mrb[0].mxu0
  %v131 = vadd.f32 %v57, %v130
  %v132 = vpop.f32.mrb[0].mxu0
  %v133 = vpop.f32.mrb[0].mxu0
  %v134 = vadd.f32 %v57, %v133
  %v135 = vpop.f32.mrb[0].mxu0
  %136 = vmatprep.mubr.bf16.mxu0 0
  %137 = vmatmul.mubr.bf16.gmra.mrb[0].mxu0 %v67
  %v138 = vpop.f32.mrb[0].mxu0
  %v139 = vadd.f32 %v57, %v138
  %v140 = vpop.f32.mrb[0].mxu0
  %v141 = vpop.f32.mrb[0].mxu0
  %v142 = vadd.f32 %v57, %v141
  %v143 = vpop.f32.mrb[0].mxu0
  %144 = vmatprep.mubr.bf16.mxu0 0
  %145 = vmatmul.mubr.bf16.gmra.mrb[0].mxu0 %v70
  %v146 = vpop.f32.mrb[0].mxu0
  %v147 = vadd.f32 %v57, %v146
  %v148 = vpop.f32.mrb[0].mxu0
  %v149 = vpop.f32.mrb[0].mxu0
  %v150 = vadd.f32 %v57, %v149
  %v151 = vpop.f32.mrb[0].mxu0
  %152 = vmatprep.mubr.bf16.mxu0 0
  %153 = vmatmul.mubr.bf16.gmra.mrb[0].mxu0 %v73
  %v154 = vpop.f32.mrb[0].mxu0
  %v155 = vadd.f32 %v57, %v154
  %v156 = vpop.f32.mrb[0].mxu0
  %v157 = vpop.f32.mrb[0].mxu0
  %v158 = vadd.f32 %v57, %v157
  %v159 = vpop.f32.mrb[0].mxu0
  %160 = vmatprep.mubr.bf16.mxu0 0
  %161 = vmatmul.mubr.bf16.gmra.mrb[0].mxu0 %v76
  %v162 = vpop.f32.mrb[0].mxu0
  %v163 = vadd.f32 %v57, %v162
  %v164 = vpop.f32.mrb[0].mxu0
  %v165 = vpop.f32.mrb[0].mxu0
  %v166 = vadd.f32 %v57, %v165
  %v167 = vpop.f32.mrb[0].mxu0
  %168 = vmatprep.mubr.bf16.mxu0 0
  %169 = vmatmul.mubr.bf16.gmra.mrb[0].mxu0 %v79
  %v170 = vpop.f32.mrb[0].mxu0
  %v171 = vadd.f32 %v57, %v170
  %v172 = vpop.f32.mrb[0].mxu0
  %v173 = vpop.f32.mrb[0].mxu0
  %v174 = vadd.f32 %v57, %v173
  %v175 = vpop.f32.mrb[0].mxu0
  %176 = vmatprep.mubr.bf16.mxu0 0
  %177 = vmatmul.mubr.bf16.gmra.mrb[0].mxu0 %v82
  %v178 = vpop.f32.mrb[0].mxu0
  %v179 = vadd.f32 %v57, %v178
  %v180 = vpop.f32.mrb[0].mxu0
  %v181 = vpop.f32.mrb[0].mxu0
  %v182 = vadd.f32 %v57, %v181
  %v183 = vpop.f32.mrb[0].mxu0
  %184 = vdwg.mxu0
  %v185 = vtanh.pop %v123
  %v186 = vtanh.pop %v126
  %v187 = vtanh.pop %v131
  %v188 = vtanh.pop %v134
  %v189 = vtanh.pop %v139
  %v190 = vtanh.pop %v142
  %v191 = vtanh.pop %v147
  %v192 = vtanh.pop %v150
  %v193 = vtanh.pop %v155
  %v194 = vtanh.pop %v158
  %v195 = vtanh.pop %v163
  %v196 = vtanh.pop %v166
  %v197 = vtanh.pop %v171
  %v198 = vtanh.pop %v174
  %v199 = vtanh.pop %v179
  %v200 = vtanh.pop %v182
  %v201 = vpack.c.bf16 %v186, %v185
  %v202 = vpack.c.bf16 %v188, %v187
  %v203 = vpack.c.bf16 %v190, %v189
  %v204 = vpack.c.bf16 %v192, %v191
  %v205 = vpack.c.bf16 %v194, %v193
  %v206 = vpack.c.bf16 %v196, %v195
  %v207 = vpack.c.bf16 %v198, %v197
  %v208 = vpack.c.bf16 %v200, %v199
  %v209 = vld [vmem:[%s3] sm:$0xf]
  %v210 = vld [vmem:[%s3 + $0x4] sm:$0xf]
  %v211 = vld [vmem:[%s3 + $0x8] sm:$0xf]
  %v212 = vld [vmem:[%s3 + $0xc] sm:$0xf]
  %v213 = vld [vmem:[%s4] sm:$0x1]
  %v215 = vlaneseq
  %v216 = vshrl.u32 %v215, 7
  %v217 = vsub.s32 0, %v216
  %v218 = vrot.slane %v213, %v217
  %v224 = vunpack.c.l.b16 %v209
  %v225 = vunpack.c.l.b16 %v210
  %v226 = vunpack.c.l.b16 %v211
  %v227 = vunpack.c.l.b16 %v212
  %v228 = vpack.c.b16 %v225, %v224
  %v229 = vpack.c.b16 %v227, %v226
  %vm232 = vcmask 261120
  %v234 = vsel %vm232, %v201, 0
  %v237 = vsel %vm232, %v202, 0
  %v240 = vsel %vm232, %v203, 0
  %v243 = vsel %vm232, %v204, 0
  %v246 = vsel %vm232, %v205, 0
  %v249 = vsel %vm232, %v206, 0
  %v252 = vsel %vm232, %v207, 0
  %v255 = vsel %vm232, %v208, 0
  %257 = vmatprep.subr.bf16.mxu0 0
  %258 = vmatpush1.bf16.msra.mxu0 %v228
  %259 = vmatprep.subr.bf16.mxu0 0
  %260 = vmatpush1.bf16.msra.mxu0 %v229
  %261 = vmatprep.subr.bf16.mxu0 0
  %262 = vmatpush1.bf16.msra.mxu0 0
  %263 = vmatprep.subr.bf16.mxu0 0
  %264 = vmatpush1.bf16.msra.mxu0 0
  %265 = vmatprep.subr.bf16.mxu0 0
  %266 = vmatpush1.bf16.msra.mxu0 0
  %267 = vmatprep.subr.bf16.mxu0 0
  %268 = vmatpush1.bf16.msra.mxu0 0
  %269 = vmatprep.subr.bf16.mxu0 0
  %270 = vmatpush1.bf16.msra.mxu0 0
  %271 = vmatprep.subr.bf16.mxu0 0
  %272 = vmatpush1.bf16.msra.mxu0 0
  %273 = vmatprep.subr.bf16.mxu0 0
  %274 = vmatpush1.bf16.msra.mxu0 0
  %275 = vmatprep.subr.bf16.mxu0 0
  %276 = vmatpush1.bf16.msra.mxu0 0
  %277 = vmatprep.subr.bf16.mxu0 0
  %278 = vmatpush1.bf16.msra.mxu0 0
  %279 = vmatprep.subr.bf16.mxu0 0
  %280 = vmatpush1.bf16.msra.mxu0 0
  %281 = vmatprep.subr.bf16.mxu0 0
  %282 = vmatpush1.bf16.msra.mxu0 0
  %283 = vmatprep.subr.bf16.mxu0 0
  %284 = vmatpush1.bf16.msra.mxu0 0
  %285 = vmatprep.subr.bf16.mxu0 0
  %286 = vmatpush1.bf16.msra.mxu0 0
  %287 = vmatprep.subr.bf16.mxu0 0
  %288 = vmatpush1.bf16.msra.mxu0 0
  %289 = vmatprep.mubr.bf16.mxu0 0
  %290 = vmatmul.mubr.bf16.gmra.mrb[0].mxu0 %v234
  %v291 = vpop.f32.mrb[0].mxu0
  %v292 = vadd.f32 %v218, %v291
  %v293 = vpop.f32.mrb[0].mxu0
  %v294 = vpop.f32.mrb[0].mxu0
  %v295 = vadd.f32 %v218, %v294
  %v296 = vpop.f32.mrb[0].mxu0
  %297 = vmatprep.mubr.bf16.mxu0 0
  %298 = vmatmul.mubr.bf16.gmra.mrb[0].mxu0 %v237
  %v299 = vpop.f32.mrb[0].mxu0
  %v300 = vadd.f32 %v218, %v299
  %v301 = vpop.f32.mrb[0].mxu0
  %v302 = vpop.f32.mrb[0].mxu0
  %v303 = vadd.f32 %v218, %v302
  %v304 = vpop.f32.mrb[0].mxu0
  %305 = vmatprep.mubr.bf16.mxu0 0
  %306 = vmatmul.mubr.bf16.gmra.mrb[0].mxu0 %v240
  %v307 = vpop.f32.mrb[0].mxu0
  %v308 = vadd.f32 %v218, %v307
  %v309 = vpop.f32.mrb[0].mxu0
  %v310 = vpop.f32.mrb[0].mxu0
  %v311 = vadd.f32 %v218, %v310
  %v312 = vpop.f32.mrb[0].mxu0
  %313 = vmatprep.mubr.bf16.mxu0 0
  %314 = vmatmul.mubr.bf16.gmra.mrb[0].mxu0 %v243
  %v315 = vpop.f32.mrb[0].mxu0
  %v316 = vadd.f32 %v218, %v315
  %v317 = vpop.f32.mrb[0].mxu0
  %v318 = vpop.f32.mrb[0].mxu0
  %v319 = vadd.f32 %v218, %v318
  %v320 = vpop.f32.mrb[0].mxu0
  %321 = vmatprep.mubr.bf16.mxu0 0
  %322 = vmatmul.mubr.bf16.gmra.mrb[0].mxu0 %v246
  %v323 = vpop.f32.mrb[0].mxu0
  %v324 = vadd.f32 %v218, %v323
  %v325 = vpop.f32.mrb[0].mxu0
  %v326 = vpop.f32.mrb[0].mxu0
  %v327 = vadd.f32 %v218, %v326
  %v328 = vpop.f32.mrb[0].mxu0
  %329 = vmatprep.mubr.bf16.mxu0 0
  %330 = vmatmul.mubr.bf16.gmra.mrb[0].mxu0 %v249
  %v331 = vpop.f32.mrb[0].mxu0
  %v332 = vadd.f32 %v218, %v331
  %v333 = vpop.f32.mrb[0].mxu0
  %v334 = vpop.f32.mrb[0].mxu0
  %v335 = vadd.f32 %v218, %v334
  %v336 = vpop.f32.mrb[0].mxu0
  %337 = vmatprep.mubr.bf16.mxu0 0
  %338 = vmatmul.mubr.bf16.gmra.mrb[0].mxu0 %v252
  %v339 = vpop.f32.mrb[0].mxu0
  %v340 = vadd.f32 %v218, %v339
  %v341 = vpop.f32.mrb[0].mxu0
  %v342 = vpop.f32.mrb[0].mxu0
  %v343 = vadd.f32 %v218, %v342
  %v344 = vpop.f32.mrb[0].mxu0
  %345 = vmatprep.mubr.bf16.mxu0 0
  %346 = vmatmul.mubr.bf16.gmra.mrb[0].mxu0 %v255
  %v347 = vpop.f32.mrb[0].mxu0
  %v348 = vadd.f32 %v218, %v347
  %v349 = vpop.f32.mrb[0].mxu0
  %v350 = vpop.f32.mrb[0].mxu0
  %v351 = vadd.f32 %v218, %v350
  %v352 = vpop.f32.mrb[0].mxu0
  %353 = vdwg.mxu0
  %v354 = vtanh.pop %v292
  %v355 = vtanh.pop %v295
  %v356 = vtanh.pop %v300
  %v357 = vtanh.pop %v303
  %v358 = vtanh.pop %v308
  %v359 = vtanh.pop %v311
  %v360 = vtanh.pop %v316
  %v361 = vtanh.pop %v319
  %v362 = vtanh.pop %v324
  %v363 = vtanh.pop %v327
  %v364 = vtanh.pop %v332
  %v365 = vtanh.pop %v335
  %v366 = vtanh.pop %v340
  %v367 = vtanh.pop %v343
  %v368 = vtanh.pop %v348
  %v369 = vtanh.pop %v351
  %v370 = vpack.c.bf16 %v355, %v354
  %v371 = vpack.c.bf16 %v357, %v356
  %v372 = vpack.c.bf16 %v359, %v358
  %v373 = vpack.c.bf16 %v361, %v360
  %v374 = vpack.c.bf16 %v363, %v362
  %v375 = vpack.c.bf16 %v365, %v364
  %v376 = vpack.c.bf16 %v367, %v366
  %v377 = vpack.c.bf16 %v369, %v368
  %v378 = vld [vmem:[%s5] sm:$0xf]
  %v379 = vld [vmem:[%s5 + $0x4] sm:$0xf]
  %v380 = vld [vmem:[%s5 + $0x8] sm:$0xf]
  %v381 = vld [vmem:[%s5 + $0xc] sm:$0xf]
  %v382 = vld [vmem:[%s6] sm:$0x1]
  %v384 = vlaneseq
  %v385 = vshrl.u32 %v384, 7
  %v386 = vsub.s32 0, %v385
  %v387 = vrot.slane %v382, %v386
  %v393 = vunpack.c.l.b16 %v378
  %v394 = vunpack.c.l.b16 %v379
  %v395 = vunpack.c.l.b16 %v380
  %v396 = vunpack.c.l.b16 %v381
  %v397 = vpack.c.b16 %v394, %v393
  %v398 = vpack.c.b16 %v396, %v395
  %v402 = vsel %vm232, %v370, 0
  %v405 = vsel %vm232, %v371, 0
  %v408 = vsel %vm232, %v372, 0
  %v411 = vsel %vm232, %v373, 0
  %v414 = vsel %vm232, %v374, 0
  %v417 = vsel %vm232, %v375, 0
  %v420 = vsel %vm232, %v376, 0
  %v423 = vsel %vm232, %v377, 0
  %425 = vmatprep.subr.bf16.mxu0 0
  %426 = vmatpush1.bf16.msra.mxu0 %v397
  %427 = vmatprep.subr.bf16.mxu0 0
  %428 = vmatpush1.bf16.msra.mxu0 %v398
  %429 = vmatprep.subr.bf16.mxu0 0
  %430 = vmatpush1.bf16.msra.mxu0 0
  %431 = vmatprep.subr.bf16.mxu0 0
  %432 = vmatpush1.bf16.msra.mxu0 0
  %433 = vmatprep.subr.bf16.mxu0 0
  %434 = vmatpush1.bf16.msra.mxu0 0
  %435 = vmatprep.subr.bf16.mxu0 0
  %436 = vmatpush1.bf16.msra.mxu0 0
  %437 = vmatprep.subr.bf16.mxu0 0
  %438 = vmatpush1.bf16.msra.mxu0 0
  %439 = vmatprep.subr.bf16.mxu0 0
  %440 = vmatpush1.bf16.msra.mxu0 0
  %441 = vmatprep.subr.bf16.mxu0 0
  %442 = vmatpush1.bf16.msra.mxu0 0
  %443 = vmatprep.subr.bf16.mxu0 0
  %444 = vmatpush1.bf16.msra.mxu0 0
  %445 = vmatprep.subr.bf16.mxu0 0
  %446 = vmatpush1.bf16.msra.mxu0 0
  %447 = vmatprep.subr.bf16.mxu0 0
  %448 = vmatpush1.bf16.msra.mxu0 0
  %449 = vmatprep.subr.bf16.mxu0 0
  %450 = vmatpush1.bf16.msra.mxu0 0
  %451 = vmatprep.subr.bf16.mxu0 0
  %452 = vmatpush1.bf16.msra.mxu0 0
  %453 = vmatprep.subr.bf16.mxu0 0
  %454 = vmatpush1.bf16.msra.mxu0 0
  %455 = vmatprep.subr.bf16.mxu0 0
  %456 = vmatpush1.bf16.msra.mxu0 0
  %457 = vmatprep.mubr.bf16.mxu0 0
  %458 = vmatmul.mubr.bf16.gmra.mrb[0].mxu0 %v402
  %v459 = vpop.f32.mrb[0].mxu0
  %v460 = vadd.f32 %v387, %v459
  %v461 = vpop.f32.mrb[0].mxu0
  %v462 = vpop.f32.mrb[0].mxu0
  %v463 = vadd.f32 %v387, %v462
  %v464 = vpop.f32.mrb[0].mxu0
  %465 = vmatprep.mubr.bf16.mxu0 0
  %466 = vmatmul.mubr.bf16.gmra.mrb[0].mxu0 %v405
  %v467 = vpop.f32.mrb[0].mxu0
  %v468 = vadd.f32 %v387, %v467
  %v469 = vpop.f32.mrb[0].mxu0
  %v470 = vpop.f32.mrb[0].mxu0
  %v471 = vadd.f32 %v387, %v470
  %v472 = vpop.f32.mrb[0].mxu0
  %473 = vmatprep.mubr.bf16.mxu0 0
  %474 = vmatmul.mubr.bf16.gmra.mrb[0].mxu0 %v408
  %v475 = vpop.f32.mrb[0].mxu0
  %v476 = vadd.f32 %v387, %v475
  %v477 = vpop.f32.mrb[0].mxu0
  %v478 = vpop.f32.mrb[0].mxu0
  %v479 = vadd.f32 %v387, %v478
  %v480 = vpop.f32.mrb[0].mxu0
  %481 = vmatprep.mubr.bf16.mxu0 0
  %482 = vmatmul.mubr.bf16.gmra.mrb[0].mxu0 %v411
  %v483 = vpop.f32.mrb[0].mxu0
  %v484 = vadd.f32 %v387, %v483
  %v485 = vpop.f32.mrb[0].mxu0
  %v486 = vpop.f32.mrb[0].mxu0
  %v487 = vadd.f32 %v387, %v486
  %v488 = vpop.f32.mrb[0].mxu0
  %489 = vmatprep.mubr.bf16.mxu0 0
  %490 = vmatmul.mubr.bf16.gmra.mrb[0].mxu0 %v414
  %v491 = vpop.f32.mrb[0].mxu0
  %v492 = vadd.f32 %v387, %v491
  %v493 = vpop.f32.mrb[0].mxu0
  %v494 = vpop.f32.mrb[0].mxu0
  %v495 = vadd.f32 %v387, %v494
  %v496 = vpop.f32.mrb[0].mxu0
  %497 = vmatprep.mubr.bf16.mxu0 0
  %498 = vmatmul.mubr.bf16.gmra.mrb[0].mxu0 %v417
  %v499 = vpop.f32.mrb[0].mxu0
  %v500 = vadd.f32 %v387, %v499
  %v501 = vpop.f32.mrb[0].mxu0
  %v502 = vpop.f32.mrb[0].mxu0
  %v503 = vadd.f32 %v387, %v502
  %v504 = vpop.f32.mrb[0].mxu0
  %505 = vmatprep.mubr.bf16.mxu0 0
  %506 = vmatmul.mubr.bf16.gmra.mrb[0].mxu0 %v420
  %v507 = vpop.f32.mrb[0].mxu0
  %v508 = vadd.f32 %v387, %v507
  %v509 = vpop.f32.mrb[0].mxu0
  %v510 = vpop.f32.mrb[0].mxu0
  %v511 = vadd.f32 %v387, %v510
  %v512 = vpop.f32.mrb[0].mxu0
  %513 = vmatprep.mubr.bf16.mxu0 0
  %514 = vmatmul.mubr.bf16.gmra.mrb[0].mxu0 %v423
  %v515 = vpop.f32.mrb[0].mxu0
  %v516 = vadd.f32 %v387, %v515
  %v517 = vpop.f32.mrb[0].mxu0
  %v518 = vpop.f32.mrb[0].mxu0
  %v519 = vadd.f32 %v387, %v518
  %v520 = vpop.f32.mrb[0].mxu0
  %521 = vdwg.mxu0
  %522 = vst.msk [vmem:[%s7] sm:$0xff] %vm232, %v460
  %523 = vst.msk [vmem:[%s7 + $0x8] sm:$0xff] %vm232, %v463
  %524 = vst.msk [vmem:[%s7 + $0x10] sm:$0xff] %vm232, %v468
  %525 = vst.msk [vmem:[%s7 + $0x18] sm:$0xff] %vm232, %v471
  %526 = vst.msk [vmem:[%s7 + $0x20] sm:$0xff] %vm232, %v476
  %527 = vst.msk [vmem:[%s7 + $0x28] sm:$0xff] %vm232, %v479
  %528 = vst.msk [vmem:[%s7 + $0x30] sm:$0xff] %vm232, %v484
  %529 = vst.msk [vmem:[%s7 + $0x38] sm:$0xff] %vm232, %v487
  %530 = vst.msk [vmem:[%s7 + $0x40] sm:$0xff] %vm232, %v492
  %531 = vst.msk [vmem:[%s7 + $0x48] sm:$0xff] %vm232, %v495
  %532 = vst.msk [vmem:[%s7 + $0x50] sm:$0xff] %vm232, %v500
  %533 = vst.msk [vmem:[%s7 + $0x58] sm:$0xff] %vm232, %v503
  %534 = vst.msk [vmem:[%s7 + $0x60] sm:$0xff] %vm232, %v508
  %535 = vst.msk [vmem:[%s7 + $0x68] sm:$0xff] %vm232, %v511
  %536 = vst.msk [vmem:[%s7 + $0x70] sm:$0xff] %vm232, %v516
  %537 = vst.msk [vmem:[%s7 + $0x78] sm:$0xff] %vm232, %v519
  // Predicated region
  $region30: #{deeponet_forward.4} parent=0 // pred_check
    _
  $region31: #{deeponet_forward.4} parent=0 // pred_check_branch
    %539 = sbr.rel (0) target = $region33
  $region32: #{deeponet_forward.4} parent=0 // pred_region
    _
  $region33: #{deeponet_forward.4} parent=0 // pred_fallthru
    _
  // Predicated region
  $region34: #{deeponet_forward.4} parent=0 // pred_check
    _
  $region35: #{deeponet_forward.4} parent=0 // pred_check_branch
    %541 = sbr.rel (0) target = $region37
  $region36: #{deeponet_forward.4} parent=0 // pred_region
    _
  $region37: #{deeponet_forward.4} parent=0 // pred_fallthru
    _

</llo_original>
